<compile_context>
chip_gen: v7x
topology: tpu7x:2x2x1
jax: 0.10.0
libtpu: 0.0.40
codegen_flags: <defaults>
</compile_context>

<pallas_src>
import functools

import jax
import jax.numpy as jnp
from jax import lax
from jax.experimental import pallas as pl
from jax.experimental.pallas import tpu as pltpu


def _folded_kernel(x_ref, w_ref, b_ref, o_ref):
    # x_ref: (TB, F)   input tile
    # w_ref: (1, F)    folded effective weight  (fc3_w @ conv1_w)
    # b_ref: (1, 1)    folded effective bias    (fc3_w @ conv1_b + fc3_b)
    # o_ref: (1, TB)   lane-dense output tile
    x = x_ref[...]
    w = w_ref[...]
    # Contract the F axes of (1, F) and (TB, F) -> (1, TB); no transpose needed.
    out = lax.dot_general(
        w, x,
        dimension_numbers=(((1,), (1,)), ((), ())),
        preferred_element_type=jnp.float32,
    )
    o_ref[...] = (out + b_ref[...]).astype(o_ref.dtype)


def _round_up(a, m):
    return ((a + m - 1) // m) * m


@functools.partial(jax.jit, static_argnames=("tile_batch",))
def model_dnn_forward(ecfp, conv1_w, conv1_b, fc3_w, fc3_b, *, tile_batch=2048):
    """ecfp: (B, F) f32 -> (1, B) f32, matching modelDnn.forward."""
    B, F = ecfp.shape
    if conv1_w.ndim == 3:            # PyTorch Conv1d weight (D, F, 1) -> (D, F)
        conv1_w = conv1_w[..., 0]
    D = conv1_w.shape[0]

    # ---- Fold the two affine layers (done once per call, outside the kernel).
    # (x @ Wc^T + bc) @ W3^T + b3 == x @ (W3 @ Wc)^T + (W3 @ bc + b3)
    w_eff = jnp.dot(fc3_w, conv1_w,
                    preferred_element_type=jnp.float32)            # (1, F)
    b_eff = (jnp.dot(fc3_w, conv1_b.reshape(D, 1),
                     preferred_element_type=jnp.float32)
             + fc3_b.reshape(1, 1)).astype(jnp.float32)            # (1, 1)
    w_eff = w_eff.astype(jnp.float32)

    # ---- Batch tiling: TB multiple of 128 (lane-dense output), pad B to TB.
    b128 = _round_up(B, 128)
    tb = min(_round_up(tile_batch, 128), b128)
    b_pad = _round_up(B, tb)
    x = ecfp.astype(jnp.float32)
    if b_pad != B:
        x = jnp.pad(x, ((0, b_pad - B), (0, 0)))
    grid = (b_pad // tb,)

    out = pl.pallas_call(
        _folded_kernel,
        out_shape=jax.ShapeDtypeStruct((1, b_pad), jnp.float32),
        grid=grid,
        in_specs=[
            pl.BlockSpec((tb, F), lambda i: (i, 0)),   # batch tile of x
            pl.BlockSpec((1, F), lambda i: (0, 0)),    # pinned folded weight
            pl.BlockSpec((1, 1), lambda i: (0, 0)),    # pinned folded bias
        ],
        out_specs=pl.BlockSpec((1, tb), lambda i: (0, i)),  # lane-dense (1, TB)
        compiler_params=pltpu.CompilerParams(
            dimension_semantics=("parallel",),
        ),
    )(x, w_eff, b_eff)

    # Drop batch padding; result is already (1, B) as in out.view(1, -1).
    return out[:, :B]


if __name__ == "__main__":
    # Small shapes consistent with the module.
    B = 8              # batch
    NUM_FEATURES = 16  # args['num_features']
    OUTPUT_DIM = 32    # args['output_dim']

    key = jax.random.PRNGKey(0)
    k_x, k_wc, k_bc, k_w3, k_b3 = jax.random.split(key, 5)

    ecfp = jax.random.normal(k_x, (B, NUM_FEATURES), dtype=jnp.float32)
    # Conv1d(num_features -> output_dim, k=1): weight (D, F, 1)
    conv1_w = jax.random.normal(
        k_wc, (OUTPUT_DIM, NUM_FEATURES, 1), dtype=jnp.float32) * 0.1
    conv1_b = jax.random.normal(k_bc, (OUTPUT_DIM,), dtype=jnp.float32) * 0.1
    # Linear(output_dim -> 1): weight (1, D), bias (1,)
    fc3_w = jax.random.normal(k_w3, (1, OUTPUT_DIM), dtype=jnp.float32) * 0.1
    fc3_b = jax.random.normal(k_b3, (1,), dtype=jnp.float32) * 0.1

    out = model_dnn_forward(ecfp, conv1_w, conv1_b, fc3_w, fc3_b)
    out = jax.block_until_ready(out)

    # Reference: same math as the PyTorch forward (unfolded, f32).
    ref = (ecfp @ conv1_w[..., 0].T + conv1_b) @ fc3_w.T + fc3_b
    ref = ref.reshape(1, B)
    assert out.shape == (1, B), out.shape
    assert jnp.allclose(out, ref, atol=1e-4, rtol=1e-4), (out, ref)

    print("KERNEL_OK")
</pallas_src>

<mosaic_0001>
module attributes {stable_mosaic.version = 11 : i64} {
  func.func @_folded_kernel(%arg0: i32, %arg1: memref<128x16xf32, #tpu.memory_space<vmem>>, %arg2: memref<1x16xf32, #tpu.memory_space<vmem>>, %arg3: memref<1x1xf32, #tpu.memory_space<vmem>>, %arg4: memref<1x128xf32, #tpu.memory_space<vmem>>) attributes {dimension_semantics = [#tpu.dimension_semantics<parallel>], iteration_bounds = array<i64: 1>, scalar_prefetch = 0 : i64, scratch_operands = 0 : i64, tpu.core_type = #tpu.core_type<tc>, window_params = [{transform_indices = @transform_0, window_bounds = array<i64: 128, 16>}, {pipeline_mode = #tpu.pipeline_mode<synchronous>, transform_indices = @transform_1, window_bounds = array<i64: 1, 16>}, {pipeline_mode = #tpu.pipeline_mode<synchronous>, transform_indices = @transform_2, window_bounds = array<i64: 1, 1>}, {transform_indices = @transform_3, window_bounds = array<i64: 1, 128>}]} {
    %c0 = arith.constant 0 : index
    %c0_0 = arith.constant 0 : index
    %0 = vector.load %arg1[%c0, %c0_0] : memref<128x16xf32, #tpu.memory_space<vmem>>, vector<128x16xf32>
    %c0_1 = arith.constant 0 : index
    %c0_2 = arith.constant 0 : index
    %1 = vector.load %arg2[%c0_1, %c0_2] : memref<1x16xf32, #tpu.memory_space<vmem>>, vector<1x16xf32>
    %cst = arith.constant dense<0.000000e+00> : vector<1x128xf32>
    %2 = tpu.matmul %1, %0, %cst {dimension_numbers = #tpu.dot_dimension_numbers<[1], [1], [0], [0], [0, 0, 1, 0], [], []>} : vector<1x16xf32>, vector<128x16xf32>, vector<1x128xf32> -> vector<1x128xf32>
    %c0_3 = arith.constant 0 : index
    %c0_4 = arith.constant 0 : index
    %3 = vector.load %arg3[%c0_3, %c0_4] : memref<1x1xf32, #tpu.memory_space<vmem>>, vector<1x1xf32>
    %4 = vector.broadcast %3 : vector<1x1xf32> to vector<1x128xf32>
    %5 = arith.addf %2, %4 : vector<1x128xf32>
    %c0_5 = arith.constant 0 : index
    %c0_6 = arith.constant 0 : index
    %6 = vector.load %arg4[%c0_5, %c0_6] : memref<1x128xf32, #tpu.memory_space<vmem>>, vector<1x128xf32>
    tpu.vector_store %arg4[%c0_5, %c0_6], %5 {strides = array<i32>} : memref<1x128xf32, #tpu.memory_space<vmem>>, vector<1x128xf32>,
    return
  }
  func.func @transform_0(%arg0: i32) -> (i32, i32) {
    %c0_i32 = arith.constant 0 : i32
    %c0_i32_0 = arith.constant 0 : i32
    return %arg0, %c0_i32 : i32, i32
  }
  func.func @transform_1(%arg0: i32) -> (i32, i32) {
    %c0_i32 = arith.constant 0 : i32
    %c0_i32_0 = arith.constant 0 : i32
    %c0_i32_1 = arith.constant 0 : i32
    return %c0_i32, %c0_i32_0 : i32, i32
  }
  func.func @transform_2(%arg0: i32) -> (i32, i32) {
    %c0_i32 = arith.constant 0 : i32
    %c0_i32_0 = arith.constant 0 : i32
    %c0_i32_1 = arith.constant 0 : i32
    return %c0_i32, %c0_i32_0 : i32, i32
  }
  func.func @transform_3(%arg0: i32) -> (i32, i32) {
    %c0_i32 = arith.constant 0 : i32
    %c0_i32_0 = arith.constant 0 : i32
    return %c0_i32, %arg0 : i32, i32
  }
}

</mosaic_0001>

<llo_original>
// kernel: model_dnn_forward.1
$region0: #{model_dnn_forward.1}
  #allocation0 [shape = 'u32[]', space=smem, size = 0x4, offset = 0x4, fixed_abs, tag = 'smem constant byte address 0x4 - core index']
  #allocation1 [shape = 'u32[144,128]{1,0:T(1,128)}', space=vmem, size = 0x12000, scoped, tag = 'internal scratch']
  #allocation2 [shape = 'f32[1,1]{1,0:T(1,128)S(1)}', space=vmem, size = 0x200, scoped, tag = 'scoped memory for model_dnn_forward.1']
  %s0 = inlined_call_operand.vmem [shape: f32[128,16], index: 0, kind: input, shape index: {}]
  %s1 = inlined_call_operand.vmem [shape: f32[1,16], index: 1, kind: input, shape index: {}]
  %s2 = inlined_call_operand.<no memory space> [shape: f32[1,1], index: 2, kind: input, shape index: {}]
  %s3 = inlined_call_operand.hbm [shape: f32[1,128], index: 3, kind: output, shape index: {}]
  %s4 = sld [smem:[#allocation0]]
  $region22: #{model_dnn_forward.1} parent=0
    _
  %s6 = ssub.s32 1, %s4
  %s7 = scalar_select 0, %s6, %s4
  %v8 = vstv %s2
  %9 = vst [vmem:[#allocation2] sm:$0x1] %v8
  $region1: #{model_dnn_forward.1} parent=0
    #allocation3 [shape = 'u8[512]{0}', space=vmem, size = 0x400, scoped, tag = 'output window, operand 0, single buffered']
    #allocation4 [shape = 's32[1]{0}', space=sflag, size = 0x4, scoped, tag = 'scoped memory for model_dnn_forward.1']
    %10 = vsyncpa [#allocation4], 0
    // Predicated region
    $region2: #{model_dnn_forward.1} parent=1 // pred_check
      _
    $region3: #{model_dnn_forward.1} parent=1 // pred_check_branch
      %12 = sbr.rel (0) target = $region5
    $region4: #{model_dnn_forward.1} parent=1 // pred_region
      _
    $region5: #{model_dnn_forward.1} parent=1 // pred_fallthru
      _
    // Predicated region
    $region6: #{model_dnn_forward.1} parent=1 // pred_check
      _
    $region7: #{model_dnn_forward.1} parent=1 // pred_check_branch
      %14 = sbr.rel (0) target = $region9
    $region8: #{model_dnn_forward.1} parent=1 // pred_region
      _
    $region9: #{model_dnn_forward.1} parent=1 // pred_fallthru
      _
    // Predicated region
    $region10: #{model_dnn_forward.1} parent=1 // pred_check
      _
    $region11: #{model_dnn_forward.1} parent=1 // pred_check_branch
      %16 = sbr.rel (0) target = $region13
    $region12: #{model_dnn_forward.1} parent=1 // pred_region
      _
    $region13: #{model_dnn_forward.1} parent=1 // pred_fallthru
      _
    %v17 = vld [vmem:[%s0] sm:$0xff]
    %v18 = vld [vmem:[%s0 + $0x8] sm:$0xff]
    %v19 = vld [vmem:[%s0 + $0x10] sm:$0xff]
    %v20 = vld [vmem:[%s0 + $0x18] sm:$0xff]
    %v21 = vld [vmem:[%s0 + $0x20] sm:$0xff]
    %v22 = vld [vmem:[%s0 + $0x28] sm:$0xff]
    %v23 = vld [vmem:[%s0 + $0x30] sm:$0xff]
    %v24 = vld [vmem:[%s0 + $0x38] sm:$0xff]
    %v25 = vld [vmem:[%s0 + $0x40] sm:$0xff]
    %v26 = vld [vmem:[%s0 + $0x48] sm:$0xff]
    %v27 = vld [vmem:[%s0 + $0x50] sm:$0xff]
    %v28 = vld [vmem:[%s0 + $0x58] sm:$0xff]
    %v29 = vld [vmem:[%s0 + $0x60] sm:$0xff]
    %v30 = vld [vmem:[%s0 + $0x68] sm:$0xff]
    %v31 = vld [vmem:[%s0 + $0x70] sm:$0xff]
    %v32 = vld [vmem:[%s0 + $0x78] sm:$0xff]
    %v33 = vld [vmem:[%s1] sm:$0x1]
    %v34 = vld [vmem:[#allocation2] sm:$0x1]
    %36 = vset.pattern.permute.xlu0 0
    %37 = vperm.xlu0 %36, %v34
    %v38 = vpop.permute.xlu0 %37
    %v40 = vlaneseq
    %v41 = vshrl.u32 %v40, 7
    %v42 = vsub.s32 0, %v41
    %v43 = vrot.slane %v38, %v42
    %vm44 = vcmask 130048
    %v46 = vsel %vm44, %v33, 0
    %v49 = vsel %vm44, %v17, 0
    %v52 = vsel %vm44, %v18, 0
    %v55 = vsel %vm44, %v19, 0
    %v58 = vsel %vm44, %v20, 0
    %v61 = vsel %vm44, %v21, 0
    %v64 = vsel %vm44, %v22, 0
    %v67 = vsel %vm44, %v23, 0
    %v70 = vsel %vm44, %v24, 0
    %v73 = vsel %vm44, %v25, 0
    %v76 = vsel %vm44, %v26, 0
    %v79 = vsel %vm44, %v27, 0
    %v82 = vsel %vm44, %v28, 0
    %v85 = vsel %vm44, %v29, 0
    %v88 = vsel %vm44, %v30, 0
    %v91 = vsel %vm44, %v31, 0
    %v94 = vsel %vm44, %v32, 0
    %96 = vmatprep.subr.mxu0 0.0
    %97 = vmatpush1.xpose.msra.mxu0 %v49
    %98 = vmatprep.subr.mxu0 0.0
    %99 = vmatpush1.xpose.msra.mxu0 %v52
    %100 = vmatprep.subr.mxu0 0.0
    %101 = vmatpush1.xpose.msra.mxu0 %v55
    %102 = vmatprep.subr.mxu0 0.0
    %103 = vmatpush1.xpose.msra.mxu0 %v58
    %104 = vmatprep.subr.mxu0 0.0
    %105 = vmatpush1.xpose.msra.mxu0 %v61
    %106 = vmatprep.subr.mxu0 0.0
    %107 = vmatpush1.xpose.msra.mxu0 %v64
    %108 = vmatprep.subr.mxu0 0.0
    %109 = vmatpush1.xpose.msra.mxu0 %v67
    %110 = vmatprep.subr.mxu0 0.0
    %111 = vmatpush1.xpose.msra.mxu0 %v70
    %112 = vmatprep.subr.mxu0 0.0
    %113 = vmatpush1.xpose.msra.mxu0 %v73
    %114 = vmatprep.subr.mxu0 0.0
    %115 = vmatpush1.xpose.msra.mxu0 %v76
    %116 = vmatprep.subr.mxu0 0.0
    %117 = vmatpush1.xpose.msra.mxu0 %v79
    %118 = vmatprep.subr.mxu0 0.0
    %119 = vmatpush1.xpose.msra.mxu0 %v82
    %120 = vmatprep.subr.mxu0 0.0
    %121 = vmatpush1.xpose.msra.mxu0 %v85
    %122 = vmatprep.subr.mxu0 0.0
    %123 = vmatpush1.xpose.msra.mxu0 %v88
    %124 = vmatprep.subr.mxu0 0.0
    %125 = vmatpush1.xpose.msra.mxu0 %v91
    %126 = vmatprep.subr.mxu0 0.0
    %127 = vmatpush1.xpose.msra.mxu0 %v94
    %128 = vmatprep.subr.mxu0 0.0
    %129 = vmatpush1.xpose.msra.mxu0 0.0
    %130 = vmatprep.subr.mxu0 0.0
    %131 = vmatpush1.xpose.msra.mxu0 0.0
    %132 = vmatprep.subr.mxu0 0.0
    %133 = vmatpush1.xpose.msra.mxu0 0.0
    %134 = vmatprep.subr.mxu0 0.0
    %135 = vmatpush1.xpose.msra.mxu0 0.0
    %136 = vmatprep.subr.mxu0 0.0
    %137 = vmatpush1.xpose.msra.mxu0 0.0
    %138 = vmatprep.subr.mxu0 0.0
    %139 = vmatpush1.xpose.msra.mxu0 0.0
    %140 = vmatprep.subr.mxu0 0.0
    %141 = vmatpush1.xpose.msra.mxu0 0.0
    %142 = vmatprep.subr.mxu0 0.0
    %143 = vmatpush1.xpose.msra.mxu0 0.0
    %144 = vmatprep.subr.mxu0 0.0
    %145 = vmatpush1.xpose.msra.mxu0 0.0
    %146 = vmatprep.subr.mxu0 0.0
    %147 = vmatpush1.xpose.msra.mxu0 0.0
    %148 = vmatprep.subr.mxu0 0.0
    %149 = vmatpush1.xpose.msra.mxu0 0.0
    %150 = vmatprep.subr.mxu0 0.0
    %151 = vmatpush1.xpose.msra.mxu0 0.0
    %152 = vmatprep.subr.mxu0 0.0
    %153 = vmatpush1.xpose.msra.mxu0 0.0
    %154 = vmatprep.subr.mxu0 0.0
    %155 = vmatpush1.xpose.msra.mxu0 0.0
    %156 = vmatprep.subr.mxu0 0.0
    %157 = vmatpush1.xpose.msra.mxu0 0.0
    %158 = vmatprep.subr.mxu0 0.0
    %159 = vmatpush1.xpose.msra.mxu0 0.0
    %160 = vmatprep.mubr.f32.mxu0 0.0
    %161 = vmatmul.mubr.f32.gmra.mrb[0].mxu0 %v46
    %v162 = vpop.f32.mrb[0].mxu0
    %v163 = vadd.f32 %v43, %v162
    %v164 = vpop.f32.mrb[0].mxu0
    %165 = vdwg.mxu0
    %166 = vst [vmem:[#allocation3] sm:$0x1] %v163
    // Predicated region
    $region14: #{model_dnn_forward.1} parent=1 // pred_check
      _
    $region15: #{model_dnn_forward.1} parent=1 // pred_check_branch
      %168 = sbr.rel (0) target = $region17
    $region16: #{model_dnn_forward.1} parent=1 // pred_region
      %s170 = ssub.s32 16, 16
      %171 = vsyncadd [#allocation4], %s170
      %s173 = sshll.u32 [#allocation3], 4
      %s174 = int_to_ptr.vmem [resolvable:$true] %s173
      %176 = dma.vmem_to_hbm [thread:$0]  %s174, 16, %s3, [#allocation4]
    $region17: #{model_dnn_forward.1} parent=1 // pred_fallthru
      _
    // Predicated region
    $region18: #{model_dnn_forward.1} parent=1 // pred_check
      _
    $region19: #{model_dnn_forward.1} parent=1 // pred_check_branch
      %178 = sbr.rel (0) target = $region21
    $region20: #{model_dnn_forward.1} parent=1 // pred_region
      %179 = dma.done [#allocation4], 16
    $region21: #{model_dnn_forward.1} parent=1 // pred_fallthru
      _
    %180 = vsyncpa [#allocation4], 1

</llo_original>
